<compile_context>
chip_gen: v7x
topology: tpu7x:2x2x1
jax: 0.10.0
libtpu: 0.0.40
codegen_flags: <defaults>
</compile_context>

<pallas_src>
from functools import partial

import jax
import jax.numpy as jnp
from jax.experimental import pallas as pl
from jax.experimental.pallas import tpu as pltpu


def _basic_block_kernel(x_ref, w_ref, b_ref, gamma_ref, beta_ref, o_ref,
                        rhs_ref, *pad_scratch, stride, padding, eps):
    """One conv group: Conv1d (single MXU matmul) -> BatchNorm1d(train) -> ReLU.

    Ref shapes (group axis already squeezed by the BlockSpecs):
      x_ref:     (N, Cin_g, L)        input slice for this group, native dtype
      w_ref:     (Cout_g, K*Cin_g)    im2col-folded weights, native dtype
      b_ref:     (Cout_g, 1)          conv bias, f32
      gamma_ref: (Cout_g, 1)          BN scale, f32
      beta_ref:  (Cout_g, 1)          BN shift, f32
      o_ref:     (Cout_g, N*L_out)    lane-dense output slab
      rhs_ref:   (K*Cin_g, N*L_out)   VMEM scratch for the im2col RHS
      pad_scratch: optional (N, Cin_g, L+2*padding) VMEM scratch (only when padding>0)
    """
    N, Cin_g, L = x_ref.shape
    _, KCin_g = w_ref.shape
    K = KCin_g // Cin_g
    NL = o_ref.shape[1]
    L_out = NL // N

    # ---- zero padding in VMEM (no padded copy of x in HBM) ----
    if padding > 0:
        xp = pad_scratch[0]
        xp[...] = jnp.zeros_like(xp)
        xp[:, :, padding:padding + L] = x_ref[...]
        x_src = xp
    else:
        x_src = x_ref

    # ---- im2col: RHS[k*Cin_g + ci, n*L_out + l] = x_pad[n, ci, l*stride + k] ----
    # N and K are small static trip counts here; each (n, k) is one slice load + store.
    # TODO(synk): for stride > 1 a stride-decomposed layout (reshape L -> (L/stride,
    # stride) in the wrapper) would avoid the strided lane gather below.
    for n in range(N):
        for k in range(K):
            if stride == 1:
                blk = x_src[n, :, k:k + L_out]
            else:
                blk = x_src[n, :, pl.ds(k, L_out, stride=stride)]
            rhs_ref[k * Cin_g:(k + 1) * Cin_g, n * L_out:(n + 1) * L_out] = blk

    # ---- conv: one matmul per group over the whole batch (MXU, f32 accumulate) ----
    y = jnp.dot(w_ref[...], rhs_ref[...], preferred_element_type=jnp.float32)
    y = y + b_ref[...]                                       # (Cout_g, N*L_out)

    # ---- BatchNorm1d (training mode: biased batch stats over N*L_out) + ReLU ----
    inv_cnt = 1.0 / float(NL)
    mean = jnp.sum(y, axis=1, keepdims=True) * inv_cnt       # (Cout_g, 1)
    d = y - mean
    var = jnp.sum(d * d, axis=1, keepdims=True) * inv_cnt    # biased variance
    scale = jax.lax.rsqrt(var + eps) * gamma_ref[...]        # (Cout_g, 1)
    out = d * scale + beta_ref[...]
    o_ref[...] = jnp.maximum(out, 0.0).astype(o_ref.dtype)


def basic_block_forward(x, weight, bias, gamma, beta,
                        *, stride=1, padding=0, groups=1, eps=1e-5):
    """Conv1d(stride, padding, groups) -> BatchNorm1d(train) -> ReLU, fused in Pallas."""
    N, Cin, L = x.shape
    Cout, Cin_g, K = weight.shape
    assert Cin_g == Cin // groups and Cout % groups == 0
    Cout_g = Cout // groups
    L_out = (L + 2 * padding - K) // stride + 1
    NL = N * L_out

    # Group-major layouts: every BlockSpec block is a full trailing slab (no (8,128)
    # divisibility issues regardless of the group count).
    x_g = jnp.transpose(x.reshape(N, groups, Cin_g, L), (1, 0, 2, 3))        # (G,N,Cin_g,L)
    # weight (Cout, Cin_g, K) -> (G, Cout_g, K*Cin_g), flattened with index k*Cin_g + ci
    w_g = jnp.transpose(weight, (0, 2, 1)).reshape(groups, Cout_g, K * Cin_g)
    b_g = bias.astype(jnp.float32).reshape(groups, Cout_g, 1)
    gm_g = gamma.astype(jnp.float32).reshape(groups, Cout_g, 1)
    bt_g = beta.astype(jnp.float32).reshape(groups, Cout_g, 1)

    scratch = [pltpu.VMEM((K * Cin_g, NL), x.dtype)]          # im2col RHS
    if padding > 0:
        scratch.append(pltpu.VMEM((N, Cin_g, L + 2 * padding), x.dtype))

    kernel = partial(_basic_block_kernel, stride=stride, padding=padding, eps=eps)
    out_slab = pl.pallas_call(
        kernel,
        grid=(groups,),
        in_specs=[
            pl.BlockSpec((None, N, Cin_g, L), lambda g: (g, 0, 0, 0)),
            pl.BlockSpec((None, Cout_g, K * Cin_g), lambda g: (g, 0, 0)),
            pl.BlockSpec((None, Cout_g, 1), lambda g: (g, 0, 0)),
            pl.BlockSpec((None, Cout_g, 1), lambda g: (g, 0, 0)),
            pl.BlockSpec((None, Cout_g, 1), lambda g: (g, 0, 0)),
        ],
        out_specs=pl.BlockSpec((None, Cout_g, NL), lambda g: (g, 0, 0)),
        out_shape=jax.ShapeDtypeStruct((groups, Cout_g, NL), x.dtype),
        scratch_shapes=scratch,
        compiler_params=pltpu.CompilerParams(
            dimension_semantics=("parallel",)),   # groups independent -> v7x 2 TCs
    )(x_g, w_g, b_g, gm_g, bt_g)

    # (G, Cout_g, N*L_out) -> (N, Cout, L_out), matching torch NCL layout.
    return jnp.transpose(out_slab.reshape(Cout, N, L_out), (1, 0, 2))


def _reference(x, weight, bias, gamma, beta, *, stride, padding, groups, eps=1e-5):
    """Pure-JAX reference of Conv1d -> train-mode BatchNorm1d -> ReLU."""
    y = jax.lax.conv_general_dilated(
        x, weight, window_strides=(stride,), padding=[(padding, padding)],
        dimension_numbers=("NCH", "OIH", "NCH"), feature_group_count=groups)
    y = y + bias[None, :, None]
    mean = jnp.mean(y, axis=(0, 2), keepdims=True)
    var = jnp.mean((y - mean) ** 2, axis=(0, 2), keepdims=True)
    yn = (y - mean) * jax.lax.rsqrt(var + eps)
    yn = yn * gamma[None, :, None] + beta[None, :, None]
    return jnp.maximum(yn, 0.0)


if __name__ == "__main__":
    # basic_block(in_channels=4, out_channels=8, kernel_size=3, stride=1, padding=1, groups=1)
    N, Cin, Cout, K, L = 2, 4, 8, 3, 16
    stride, padding, groups = 1, 1, 1

    key = jax.random.PRNGKey(0)
    kx, kw = jax.random.split(key)
    x = jax.random.normal(kx, (N, Cin, L), dtype=jnp.float32)

    # kaiming_normal_(mode='fan_out', nonlinearity='relu'): std = sqrt(2 / (C_out * K))
    std = (2.0 / (Cout * K)) ** 0.5
    weight = std * jax.random.normal(kw, (Cout, Cin // groups, K), dtype=jnp.float32)
    bias = jnp.zeros((Cout,), jnp.float32)      # constant_(bias, 0)
    gamma = jnp.ones((Cout,), jnp.float32)      # BN affine defaults
    beta = jnp.zeros((Cout,), jnp.float32)

    out = basic_block_forward(x, weight, bias, gamma, beta,
                              stride=stride, padding=padding, groups=groups)
    out = jax.block_until_ready(out)

    ref = _reference(x, weight, bias, gamma, beta,
                     stride=stride, padding=padding, groups=groups)
    assert out.shape == ref.shape == (N, Cout, (L + 2 * padding - K) // stride + 1)
    err = jnp.max(jnp.abs(out - ref))
    assert jnp.allclose(out, ref, atol=1e-4, rtol=1e-4), f"max err {err}"

    print("KERNEL_OK")
</pallas_src>

<mosaic_0001>
module attributes {stable_mosaic.version = 11 : i64} {
  func.func @_basic_block_kernel(%arg0: i32, %arg1: memref<1x2x4x16xf32, #tpu.memory_space<vmem>>, %arg2: memref<1x8x12xf32, #tpu.memory_space<vmem>>, %arg3: memref<1x8x1xf32, #tpu.memory_space<vmem>>, %arg4: memref<1x8x1xf32, #tpu.memory_space<vmem>>, %arg5: memref<1x8x1xf32, #tpu.memory_space<vmem>>, %arg6: memref<1x8x32xf32, #tpu.memory_space<vmem>>, %arg7: memref<12x32xf32, #tpu.memory_space<vmem>>, %arg8: memref<2x4x18xf32, #tpu.memory_space<vmem>>) attributes {dimension_semantics = [#tpu.dimension_semantics<parallel>], iteration_bounds = array<i64: 1>, scalar_prefetch = 0 : i64, scratch_operands = 2 : i64, tpu.core_type = #tpu.core_type<tc>, window_params = [{transform_indices = @transform_0, window_bounds = array<i64: 1, 2, 4, 16>}, {transform_indices = @transform_1, window_bounds = array<i64: 1, 8, 12>}, {transform_indices = @transform_2, window_bounds = array<i64: 1, 8, 1>}, {transform_indices = @transform_3, window_bounds = array<i64: 1, 8, 1>}, {transform_indices = @transform_4, window_bounds = array<i64: 1, 8, 1>}, {transform_indices = @transform_5, window_bounds = array<i64: 1, 8, 32>}]} {
    %cst = arith.constant 0.000000e+00 : f32
    %0 = vector.broadcast %cst : f32 to vector<2x4x18xf32>
    %c0 = arith.constant 0 : index
    %c0_0 = arith.constant 0 : index
    %c0_1 = arith.constant 0 : index
    %1 = vector.load %arg8[%c0, %c0_0, %c0_1] : memref<2x4x18xf32, #tpu.memory_space<vmem>>, vector<2x4x18xf32>
    tpu.vector_store %arg8[%c0, %c0_0, %c0_1], %0 {strides = array<i32>} : memref<2x4x18xf32, #tpu.memory_space<vmem>>, vector<2x4x18xf32>,
    %c0_2 = arith.constant 0 : index
    %c0_3 = arith.constant 0 : index
    %c0_4 = arith.constant 0 : index
    %c0_5 = arith.constant 0 : index
    %2 = vector.load %arg1[%c0_2, %c0_3, %c0_4, %c0_5] : memref<1x2x4x16xf32, #tpu.memory_space<vmem>>, vector<1x2x4x16xf32>
    %3 = vector.shape_cast %2 : vector<1x2x4x16xf32> to vector<2x4x16xf32>
    %c0_6 = arith.constant 0 : index
    %c0_7 = arith.constant 0 : index
    %c1 = arith.constant 1 : index
    %4 = vector.load %arg8[%c0_6, %c0_7, %c1] : memref<2x4x18xf32, #tpu.memory_space<vmem>>, vector<2x4x16xf32>
    tpu.vector_store %arg8[%c0_6, %c0_7, %c1], %3 {strides = array<i32>} : memref<2x4x18xf32, #tpu.memory_space<vmem>>, vector<2x4x16xf32>,
    %c0_8 = arith.constant 0 : index
    %c0_9 = arith.constant 0 : index
    %c0_10 = arith.constant 0 : index
    %5 = vector.load %arg8[%c0_8, %c0_9, %c0_10] : memref<2x4x18xf32, #tpu.memory_space<vmem>>, vector<1x4x16xf32>
    %6 = vector.shape_cast %5 : vector<1x4x16xf32> to vector<4x16xf32>
    %c0_11 = arith.constant 0 : index
    %c0_12 = arith.constant 0 : index
    %7 = vector.load %arg7[%c0_11, %c0_12] : memref<12x32xf32, #tpu.memory_space<vmem>>, vector<4x16xf32>
    tpu.vector_store %arg7[%c0_11, %c0_12], %6 {strides = array<i32>} : memref<12x32xf32, #tpu.memory_space<vmem>>, vector<4x16xf32>,
    %c0_13 = arith.constant 0 : index
    %c0_14 = arith.constant 0 : index
    %c1_15 = arith.constant 1 : index
    %8 = vector.load %arg8[%c0_13, %c0_14, %c1_15] : memref<2x4x18xf32, #tpu.memory_space<vmem>>, vector<1x4x16xf32>
    %9 = vector.shape_cast %8 : vector<1x4x16xf32> to vector<4x16xf32>
    %c4 = arith.constant 4 : index
    %c0_16 = arith.constant 0 : index
    %10 = vector.load %arg7[%c4, %c0_16] : memref<12x32xf32, #tpu.memory_space<vmem>>, vector<4x16xf32>
    tpu.vector_store %arg7[%c4, %c0_16], %9 {strides = array<i32>} : memref<12x32xf32, #tpu.memory_space<vmem>>, vector<4x16xf32>,
    %c0_17 = arith.constant 0 : index
    %c0_18 = arith.constant 0 : index
    %c2 = arith.constant 2 : index
    %11 = vector.load %arg8[%c0_17, %c0_18, %c2] : memref<2x4x18xf32, #tpu.memory_space<vmem>>, vector<1x4x16xf32>
    %12 = vector.shape_cast %11 : vector<1x4x16xf32> to vector<4x16xf32>
    %c8 = arith.constant 8 : index
    %c0_19 = arith.constant 0 : index
    %13 = vector.load %arg7[%c8, %c0_19] : memref<12x32xf32, #tpu.memory_space<vmem>>, vector<4x16xf32>
    tpu.vector_store %arg7[%c8, %c0_19], %12 {strides = array<i32>} : memref<12x32xf32, #tpu.memory_space<vmem>>, vector<4x16xf32>,
    %c1_20 = arith.constant 1 : index
    %c0_21 = arith.constant 0 : index
    %c0_22 = arith.constant 0 : index
    %14 = vector.load %arg8[%c1_20, %c0_21, %c0_22] : memref<2x4x18xf32, #tpu.memory_space<vmem>>, vector<1x4x16xf32>
    %15 = vector.shape_cast %14 : vector<1x4x16xf32> to vector<4x16xf32>
    %c0_23 = arith.constant 0 : index
    %c16 = arith.constant 16 : index
    %16 = vector.load %arg7[%c0_23, %c16] : memref<12x32xf32, #tpu.memory_space<vmem>>, vector<4x16xf32>
    tpu.vector_store %arg7[%c0_23, %c16], %15 {strides = array<i32>} : memref<12x32xf32, #tpu.memory_space<vmem>>, vector<4x16xf32>,
    %c1_24 = arith.constant 1 : index
    %c0_25 = arith.constant 0 : index
    %c1_26 = arith.constant 1 : index
    %17 = vector.load %arg8[%c1_24, %c0_25, %c1_26] : memref<2x4x18xf32, #tpu.memory_space<vmem>>, vector<1x4x16xf32>
    %18 = vector.shape_cast %17 : vector<1x4x16xf32> to vector<4x16xf32>
    %c4_27 = arith.constant 4 : index
    %c16_28 = arith.constant 16 : index
    %19 = vector.load %arg7[%c4_27, %c16_28] : memref<12x32xf32, #tpu.memory_space<vmem>>, vector<4x16xf32>
    tpu.vector_store %arg7[%c4_27, %c16_28], %18 {strides = array<i32>} : memref<12x32xf32, #tpu.memory_space<vmem>>, vector<4x16xf32>,
    %c1_29 = arith.constant 1 : index
    %c0_30 = arith.constant 0 : index
    %c2_31 = arith.constant 2 : index
    %20 = vector.load %arg8[%c1_29, %c0_30, %c2_31] : memref<2x4x18xf32, #tpu.memory_space<vmem>>, vector<1x4x16xf32>
    %21 = vector.shape_cast %20 : vector<1x4x16xf32> to vector<4x16xf32>
    %c8_32 = arith.constant 8 : index
    %c16_33 = arith.constant 16 : index
    %22 = vector.load %arg7[%c8_32, %c16_33] : memref<12x32xf32, #tpu.memory_space<vmem>>, vector<4x16xf32>
    tpu.vector_store %arg7[%c8_32, %c16_33], %21 {strides = array<i32>} : memref<12x32xf32, #tpu.memory_space<vmem>>, vector<4x16xf32>,
    %c0_34 = arith.constant 0 : index
    %c0_35 = arith.constant 0 : index
    %c0_36 = arith.constant 0 : index
    %23 = vector.load %arg2[%c0_34, %c0_35, %c0_36] : memref<1x8x12xf32, #tpu.memory_space<vmem>>, vector<1x8x12xf32>
    %24 = vector.shape_cast %23 : vector<1x8x12xf32> to vector<8x12xf32>
    %c0_37 = arith.constant 0 : index
    %c0_38 = arith.constant 0 : index
    %25 = vector.load %arg7[%c0_37, %c0_38] : memref<12x32xf32, #tpu.memory_space<vmem>>, vector<12x32xf32>
    %cst_39 = arith.constant dense<0.000000e+00> : vector<8x32xf32>
    %26 = tpu.matmul %24, %25, %cst_39 {dimension_numbers = #tpu.dot_dimension_numbers<[1], [0], [0], [1], [0, 0, 1, 1], [], []>} : vector<8x12xf32>, vector<12x32xf32>, vector<8x32xf32> -> vector<8x32xf32>
    %c0_40 = arith.constant 0 : index
    %c0_41 = arith.constant 0 : index
    %c0_42 = arith.constant 0 : index
    %27 = vector.load %arg3[%c0_40, %c0_41, %c0_42] : memref<1x8x1xf32, #tpu.memory_space<vmem>>, vector<1x8x1xf32>
    %28 = vector.shape_cast %27 : vector<1x8x1xf32> to vector<8x1xf32>
    %29 = vector.broadcast %28 : vector<8x1xf32> to vector<8x32xf32>
    %30 = arith.addf %26, %29 : vector<8x32xf32>
    %cst_43 = arith.constant dense<0.000000e+00> : vector<8xf32>
    %31 = vector.multi_reduction <add>, %30, %cst_43 [1] : vector<8x32xf32> to vector<8xf32>
    %32 = vector.shape_cast %31 : vector<8xf32> to vector<8x1xf32>
    %cst_44 = arith.constant 3.125000e-02 : f32
    %33 = vector.broadcast %cst_44 : f32 to vector<8x1xf32>
    %34 = arith.mulf %32, %33 : vector<8x1xf32>
    %35 = vector.broadcast %34 : vector<8x1xf32> to vector<8x32xf32>
    %36 = arith.subf %30, %35 : vector<8x32xf32>
    %37 = arith.mulf %36, %36 : vector<8x32xf32>
    %cst_45 = arith.constant dense<0.000000e+00> : vector<8xf32>
    %38 = vector.multi_reduction <add>, %37, %cst_45 [1] : vector<8x32xf32> to vector<8xf32>
    %39 = vector.shape_cast %38 : vector<8xf32> to vector<8x1xf32>
    %cst_46 = arith.constant 3.125000e-02 : f32
    %40 = vector.broadcast %cst_46 : f32 to vector<8x1xf32>
    %41 = arith.mulf %39, %40 : vector<8x1xf32>
    %cst_47 = arith.constant 9.99999974E-6 : f32
    %42 = vector.broadcast %cst_47 : f32 to vector<8x1xf32>
    %43 = arith.addf %41, %42 : vector<8x1xf32>
    %44 = math.rsqrt %43 : vector<8x1xf32>
    %c0_48 = arith.constant 0 : index
    %c0_49 = arith.constant 0 : index
    %c0_50 = arith.constant 0 : index
    %45 = vector.load %arg4[%c0_48, %c0_49, %c0_50] : memref<1x8x1xf32, #tpu.memory_space<vmem>>, vector<1x8x1xf32>
    %46 = vector.shape_cast %45 : vector<1x8x1xf32> to vector<8x1xf32>
    %47 = arith.mulf %44, %46 : vector<8x1xf32>
    %48 = vector.broadcast %47 : vector<8x1xf32> to vector<8x32xf32>
    %49 = arith.mulf %36, %48 : vector<8x32xf32>
    %c0_51 = arith.constant 0 : index
    %c0_52 = arith.constant 0 : index
    %c0_53 = arith.constant 0 : index
    %50 = vector.load %arg5[%c0_51, %c0_52, %c0_53] : memref<1x8x1xf32, #tpu.memory_space<vmem>>, vector<1x8x1xf32>
    %51 = vector.shape_cast %50 : vector<1x8x1xf32> to vector<8x1xf32>
    %52 = vector.broadcast %51 : vector<8x1xf32> to vector<8x32xf32>
    %53 = arith.addf %49, %52 : vector<8x32xf32>
    %cst_54 = arith.constant 0.000000e+00 : f32
    %54 = vector.broadcast %cst_54 : f32 to vector<8x32xf32>
    %55 = arith.maximumf %53, %54 : vector<8x32xf32>
    %c0_55 = arith.constant 0 : index
    %c0_56 = arith.constant 0 : index
    %c0_57 = arith.constant 0 : index
    %56 = vector.load %arg6[%c0_55, %c0_56, %c0_57] : memref<1x8x32xf32, #tpu.memory_space<vmem>>, vector<1x8x32xf32>
    %57 = vector.shape_cast %56 : vector<1x8x32xf32> to vector<8x32xf32>
    %58 = vector.shape_cast %55 : vector<8x32xf32> to vector<1x8x32xf32>
    tpu.vector_store %arg6[%c0_55, %c0_56, %c0_57], %58 {strides = array<i32>} : memref<1x8x32xf32, #tpu.memory_space<vmem>>, vector<1x8x32xf32>,
    return
  }
  func.func @transform_0(%arg0: i32) -> (i32, i32, i32, i32) {
    %c0_i32 = arith.constant 0 : i32
    %c0_i32_0 = arith.constant 0 : i32
    %c0_i32_1 = arith.constant 0 : i32
    %c0_i32_2 = arith.constant 0 : i32
    return %arg0, %c0_i32, %c0_i32_0, %c0_i32_1 : i32, i32, i32, i32
  }
  func.func @transform_1(%arg0: i32) -> (i32, i32, i32) {
    %c0_i32 = arith.constant 0 : i32
    %c0_i32_0 = arith.constant 0 : i32
    %c0_i32_1 = arith.constant 0 : i32
    return %arg0, %c0_i32, %c0_i32_0 : i32, i32, i32
  }
  func.func @transform_2(%arg0: i32) -> (i32, i32, i32) {
    %c0_i32 = arith.constant 0 : i32
    %c0_i32_0 = arith.constant 0 : i32
    %c0_i32_1 = arith.constant 0 : i32
    return %arg0, %c0_i32, %c0_i32_0 : i32, i32, i32
  }
  func.func @transform_3(%arg0: i32) -> (i32, i32, i32) {
    %c0_i32 = arith.constant 0 : i32
    %c0_i32_0 = arith.constant 0 : i32
    %c0_i32_1 = arith.constant 0 : i32
    return %arg0, %c0_i32, %c0_i32_0 : i32, i32, i32
  }
  func.func @transform_4(%arg0: i32) -> (i32, i32, i32) {
    %c0_i32 = arith.constant 0 : i32
    %c0_i32_0 = arith.constant 0 : i32
    %c0_i32_1 = arith.constant 0 : i32
    return %arg0, %c0_i32, %c0_i32_0 : i32, i32, i32
  }
  func.func @transform_5(%arg0: i32) -> (i32, i32, i32) {
    %c0_i32 = arith.constant 0 : i32
    %c0_i32_0 = arith.constant 0 : i32
    %c0_i32_1 = arith.constant 0 : i32
    return %arg0, %c0_i32, %c0_i32_0 : i32, i32, i32
  }
}

</mosaic_0001>

<llo_original>
// kernel: tpu_custom_call.1
$region0: #{tpu_custom_call.1}
  #allocation0 [shape = 'u32[]', space=smem, size = 0x4, offset = 0x4, fixed_abs, tag = 'smem constant byte address 0x4 - core index']
  #allocation1 [shape = 'u32[144,128]{1,0:T(1,128)}', space=vmem, size = 0x12000, scoped, tag = 'internal scratch']
  #allocation2 [shape = 'f32[12,32]{1,0:T(8,128)}', space=vmem, size = 0x2000, scoped, tag = 'scratch operand']
  #allocation3 [shape = 'f32[2,4,18]{2,1,0:T(4,128)}', space=vmem, size = 0x1000, scoped, tag = 'scratch operand']
  %s0 = inlined_call_operand.vmem [shape: f32[1,2,4,16], index: 0, kind: input, shape index: {}]
  %s1 = inlined_call_operand.vmem [shape: f32[1,8,12], index: 1, kind: input, shape index: {}]
  %s2 = inlined_call_operand.vmem [shape: f32[1,8,1], index: 2, kind: input, shape index: {}]
  %s3 = inlined_call_operand.vmem [shape: f32[1,8,1], index: 3, kind: input, shape index: {}]
  %s4 = inlined_call_operand.vmem [shape: f32[1,8,1], index: 4, kind: input, shape index: {}]
  %s5 = inlined_call_operand.hbm [shape: f32[1,8,32], index: 5, kind: output, shape index: {}]
  %s6 = sld [smem:[#allocation0]]
  $region30: #{tpu_custom_call.1} parent=0
    _
  %s8 = ssub.s32 1, %s6
  %s9 = scalar_select 0, %s8, %s6
  $region1: #{tpu_custom_call.1} parent=0
    #allocation4 [shape = 'u8[4096]{0}', space=vmem, size = 0x1000, scoped, tag = 'output window, operand 0, single buffered']
    #allocation5 [shape = 's32[1]{0}', space=sflag, size = 0x4, scoped, tag = 'scoped memory for tpu_custom_call.1']
    %10 = vsyncpa [#allocation5], 0
    // Predicated region
    $region2: #{tpu_custom_call.1} parent=1 // pred_check
      _
    $region3: #{tpu_custom_call.1} parent=1 // pred_check_branch
      %12 = sbr.rel (0) target = $region5
    $region4: #{tpu_custom_call.1} parent=1 // pred_region
      _
    $region5: #{tpu_custom_call.1} parent=1 // pred_fallthru
      _
    // Predicated region
    $region6: #{tpu_custom_call.1} parent=1 // pred_check
      _
    $region7: #{tpu_custom_call.1} parent=1 // pred_check_branch
      %14 = sbr.rel (0) target = $region9
    $region8: #{tpu_custom_call.1} parent=1 // pred_region
      _
    $region9: #{tpu_custom_call.1} parent=1 // pred_fallthru
      _
    // Predicated region
    $region10: #{tpu_custom_call.1} parent=1 // pred_check
      _
    $region11: #{tpu_custom_call.1} parent=1 // pred_check_branch
      %16 = sbr.rel (0) target = $region13
    $region12: #{tpu_custom_call.1} parent=1 // pred_region
      _
    $region13: #{tpu_custom_call.1} parent=1 // pred_fallthru
      _
    // Predicated region
    $region14: #{tpu_custom_call.1} parent=1 // pred_check
      _
    $region15: #{tpu_custom_call.1} parent=1 // pred_check_branch
      %18 = sbr.rel (0) target = $region17
    $region16: #{tpu_custom_call.1} parent=1 // pred_region
      _
    $region17: #{tpu_custom_call.1} parent=1 // pred_fallthru
      _
    // Predicated region
    $region18: #{tpu_custom_call.1} parent=1 // pred_check
      _
    $region19: #{tpu_custom_call.1} parent=1 // pred_check_branch
      %20 = sbr.rel (0) target = $region21
    $region20: #{tpu_custom_call.1} parent=1 // pred_region
      _
    $region21: #{tpu_custom_call.1} parent=1 // pred_fallthru
      _
    %vm21 = vcmask 142336
    %22 = vst.msk [vmem:[#allocation3] sm:$0xf] %vm21, 0.0
    %23 = vst.msk [vmem:[#allocation3 + $0x4] sm:$0xf] %vm21, 0.0
    %v24 = vld [vmem:[%s0] sm:$0xf]
    %v25 = vld [vmem:[%s0 + $0x4] sm:$0xf]
    %28 = vrot.lane.b32.xlu0 %v24, 1
    %v29 = vpop.permute.xlu0 %28
    %30 = vrot.lane.b32.xlu0 %v25, 1
    %v31 = vpop.permute.xlu0 %30
    %vm34 = vcmask 134152
    %35 = vst.msk [vmem:[#allocation3] sm:$0xf] %vm34, %v29
    %36 = vst.msk [vmem:[#allocation3 + $0x4] sm:$0xf] %vm34, %v31
    %v37 = vld [vmem:[#allocation3] sm:$0xf]
    %vm38 = vcmask 125952
    %39 = vst.msk [vmem:[#allocation2] sm:$0xf] %vm38, %v37
    %v40 = vld [vmem:[#allocation3] sm:$0xf]
    %42 = vrot.lane.b32.xlu0 %v40, 127
    %v43 = vpop.permute.xlu0 %42
    %45 = vst.msk [vmem:[#allocation2 + $0x4] sm:$0xf] %vm38, %v43
    %v46 = vld [vmem:[#allocation3] sm:$0xf]
    %48 = vrot.lane.b32.xlu0 %v46, 126
    %v49 = vpop.permute.xlu0 %48
    %51 = vst.msk [vmem:[#allocation2 + $0x8] sm:$0xf] %vm38, %v49
    %s52 = scalar_lea.vmem [#allocation3], 4
    %v53 = vld [vmem:[%s52] sm:$0xf]
    %55 = vrot.lane.b32.xlu0 %v53, 16
    %v56 = vpop.permute.xlu0 %55
    %vm58 = vcmask 257152
    %59 = vst.msk [vmem:[#allocation2] sm:$0xf] %vm58, %v56
    %v60 = vld [vmem:[%s52] sm:$0xf]
    %62 = vrot.lane.b32.xlu0 %v60, 15
    %v63 = vpop.permute.xlu0 %62
    %65 = vst.msk [vmem:[#allocation2 + $0x4] sm:$0xf] %vm58, %v63
    %v66 = vld [vmem:[%s52] sm:$0xf]
    %68 = vrot.lane.b32.xlu0 %v66, 14
    %v69 = vpop.permute.xlu0 %68
    %71 = vst.msk [vmem:[#allocation2 + $0x8] sm:$0xf] %vm58, %v69
    %v72 = vld [vmem:[%s1] sm:$0xff]
    %v73 = vld [vmem:[#allocation2] sm:$0xff]
    %v74 = vld [vmem:[#allocation2 + $0x8] sm:$0xf]
    %v75 = vld [vmem:[%s2] sm:$0xff]
    %77 = vset.pattern.permute.xlu0 0
    %78 = vperm.xlu0 %77, %v75
    %v79 = vpop.permute.xlu0 %78
    %vm81 = vcmask 97280
    %v83 = vsel %vm81, %v72, 0
    %vm85 = vcmask 1043456
    %v87 = vsel %vm85, %v74, 0
    %89 = vmatprep.subr.mxu0 0.0
    %90 = vmatpush1.msra.mxu0 %v73
    %91 = vmatprep.subr.mxu0 0.0
    %92 = vmatpush1.msra.mxu0 %v87
    %93 = vmatprep.subr.mxu0 0.0
    %94 = vmatpush1.msra.mxu0 0.0
    %95 = vmatprep.subr.mxu0 0.0
    %96 = vmatpush1.msra.mxu0 0.0
    %97 = vmatprep.subr.mxu0 0.0
    %98 = vmatpush1.msra.mxu0 0.0
    %99 = vmatprep.subr.mxu0 0.0
    %100 = vmatpush1.msra.mxu0 0.0
    %101 = vmatprep.subr.mxu0 0.0
    %102 = vmatpush1.msra.mxu0 0.0
    %103 = vmatprep.subr.mxu0 0.0
    %104 = vmatpush1.msra.mxu0 0.0
    %105 = vmatprep.subr.mxu0 0.0
    %106 = vmatpush1.msra.mxu0 0.0
    %107 = vmatprep.subr.mxu0 0.0
    %108 = vmatpush1.msra.mxu0 0.0
    %109 = vmatprep.subr.mxu0 0.0
    %110 = vmatpush1.msra.mxu0 0.0
    %111 = vmatprep.subr.mxu0 0.0
    %112 = vmatpush1.msra.mxu0 0.0
    %113 = vmatprep.subr.mxu0 0.0
    %114 = vmatpush1.msra.mxu0 0.0
    %115 = vmatprep.subr.mxu0 0.0
    %116 = vmatpush1.msra.mxu0 0.0
    %117 = vmatprep.subr.mxu0 0.0
    %118 = vmatpush1.msra.mxu0 0.0
    %119 = vmatprep.subr.mxu0 0.0
    %120 = vmatpush1.msra.mxu0 0.0
    %121 = vmatprep.subr.mxu0 0.0
    %122 = vmatpush1.msra.mxu0 0.0
    %123 = vmatprep.subr.mxu0 0.0
    %124 = vmatpush1.msra.mxu0 0.0
    %125 = vmatprep.subr.mxu0 0.0
    %126 = vmatpush1.msra.mxu0 0.0
    %127 = vmatprep.subr.mxu0 0.0
    %128 = vmatpush1.msra.mxu0 0.0
    %129 = vmatprep.subr.mxu0 0.0
    %130 = vmatpush1.msra.mxu0 0.0
    %131 = vmatprep.subr.mxu0 0.0
    %132 = vmatpush1.msra.mxu0 0.0
    %133 = vmatprep.subr.mxu0 0.0
    %134 = vmatpush1.msra.mxu0 0.0
    %135 = vmatprep.subr.mxu0 0.0
    %136 = vmatpush1.msra.mxu0 0.0
    %137 = vmatprep.subr.mxu0 0.0
    %138 = vmatpush1.msra.mxu0 0.0
    %139 = vmatprep.subr.mxu0 0.0
    %140 = vmatpush1.msra.mxu0 0.0
    %141 = vmatprep.subr.mxu0 0.0
    %142 = vmatpush1.msra.mxu0 0.0
    %143 = vmatprep.subr.mxu0 0.0
    %144 = vmatpush1.msra.mxu0 0.0
    %145 = vmatprep.subr.mxu0 0.0
    %146 = vmatpush1.msra.mxu0 0.0
    %147 = vmatprep.subr.mxu0 0.0
    %148 = vmatpush1.msra.mxu0 0.0
    %149 = vmatprep.subr.mxu0 0.0
    %150 = vmatpush1.msra.mxu0 0.0
    %151 = vmatprep.subr.mxu0 0.0
    %152 = vmatpush1.msra.mxu0 0.0
    %153 = vmatprep.mubr.f32.mxu0 0.0
    %154 = vmatmul.mubr.f32.gmra.mrb[0].mxu0 %v83
    %v155 = vpop.f32.mrb[0].mxu0
    %v156 = vadd.f32 %v79, %v155
    %v157 = vpop.f32.mrb[0].mxu0
    %158 = vdwg.mxu0
    %vm159 = vcmask 261120
    %v160 = vsel %vm159, %v156, 0.0
    %161 = vadd.xlane.f32.xlu0 %v160
    %v162 = vpop.xlane.xlu0 %161
    %v163 = vmul.f32 %v162, 0.03125
    %v164 = vsub.f32 %v156, %v163
    %v165 = vmul.f32 %v164, %v164
    %v166 = vsel %vm159, %v165, 0.0
    %167 = vadd.xlane.f32.xlu0 %v166
    %v168 = vpop.xlane.xlu0 %167
    %v169 = vmul.f32 %v168, 0.03125
    %v170 = vadd.f32 %v169, 1e-05
    %v171 = vrsqrt.pop %v170
    %v172 = vld [vmem:[%s3] sm:$0xff]
    %v173 = vmul.f32 %v171, %v172
    %175 = vset.pattern.permute.xlu0 0
    %176 = vperm.xlu0 %175, %v173
    %v177 = vpop.permute.xlu0 %176
    %v179 = vmul.f32 %v164, %v177
    %v180 = vld [vmem:[%s4] sm:$0xff]
    %182 = vset.pattern.permute.xlu0 0
    %183 = vperm.xlu0 %182, %v180
    %v184 = vpop.permute.xlu0 %183
    %v186 = vadd.f32 %v179, %v184
    %v187 = vmax.f32 %v186, 0.0
    %188 = vst.msk [vmem:[#allocation4] sm:$0xff] %vm159, %v187
    // Predicated region
    $region22: #{tpu_custom_call.1} parent=1 // pred_check
      _
    $region23: #{tpu_custom_call.1} parent=1 // pred_check_branch
      %190 = sbr.rel (0) target = $region25
    $region24: #{tpu_custom_call.1} parent=1 // pred_region
      %s192 = ssub.s32 128, 128
      %193 = vsyncadd [#allocation5], %s192
      %s195 = sshll.u32 [#allocation4], 4
      %s196 = int_to_ptr.vmem [resolvable:$true] %s195
      %198 = dma.vmem_to_hbm [thread:$0]  %s196, 128, %s5, [#allocation5]
    $region25: #{tpu_custom_call.1} parent=1 // pred_fallthru
      _
    // Predicated region
    $region26: #{tpu_custom_call.1} parent=1 // pred_check
      _
    $region27: #{tpu_custom_call.1} parent=1 // pred_check_branch
      %200 = sbr.rel (0) target = $region29
    $region28: #{tpu_custom_call.1} parent=1 // pred_region
      %201 = dma.done [#allocation5], 128
    $region29: #{tpu_custom_call.1} parent=1 // pred_fallthru
      _
    %202 = vsyncpa [#allocation5], 1

</llo_original>
